<compile_context>
chip_gen: v7x
topology: tpu7x:2x2x1
jax: 0.10.0
libtpu: 0.0.40
codegen_flags: <defaults>
</compile_context>

<pallas_src>
import math
import functools

import jax
import jax.numpy as jnp
from jax.experimental import pallas as pl
from jax.experimental.pallas import tpu as pltpu


def _mha_kernel(q_ref, wqkv_ref, wo_ref, bo_ref, x_ref, att_ref, *,
                dim, inv_scale):
    # q_ref: (B, S, D); wqkv_ref: (D, 3D) pre-transposed; wo_ref: (D, D)
    # folded over heads and pre-transposed; bo_ref: (1, D).
    q = q_ref[...]                                              # (B, S, D)

    # One wide projection matmul: (B, S, D) @ (D, 3D) -> (B, S, 3D).
    qkv = jnp.einsum("bsd,de->bse", q, wqkv_ref[...],
                     preferred_element_type=jnp.float32)
    qp = qkv[..., 0 * dim:1 * dim]                              # (B, S, D)
    kp = qkv[..., 1 * dim:2 * dim]
    vp = qkv[..., 2 * dim:3 * dim]

    # Scores: contract the feature dim of both operands directly (no kp.T).
    scores = jnp.einsum("bsd,btd->bst", qp, kp,
                        preferred_element_type=jnp.float32) * inv_scale

    # Hand-rolled softmax with +1e-5 (exactly as in the PyTorch module).
    m = jnp.max(scores, axis=-1, keepdims=True)
    e = jnp.exp(scores - m)
    denom = jnp.sum(e, axis=-1, keepdims=True)
    soft = e * pl.reciprocal(denom, approx=False) + 1e-05       # (B, S, S)

    head = jnp.einsum("bst,btd->bsd", soft, vp,
                      preferred_element_type=jnp.float32)       # (B, S, D)

    # fc_output folded over heads (all head outputs are identical).
    out = jnp.einsum("bsd,de->bse", head, wo_ref[...],
                     preferred_element_type=jnp.float32) + bo_ref[...]

    x_ref[...] = out
    att_ref[...] = soft


def multi_head_attention(q, k, v, params, *, dim, n_heads):
    """q, k, v: (B, S, dim). k, v are ignored (matches the PyTorch forward)."""
    del k, v  # the reference module only ever uses q
    B, S, D = q.shape
    assert D == dim
    inv_scale = 1.0 / (math.sqrt(dim) * 10.0)

    wq, wk, wv, wo, bo = (params["wq"], params["wk"], params["wv"],
                          params["wo"], params["bo"])

    # Pre-stack + pre-transpose the shared projections into a (D, 3D) operand.
    w_qkv = jnp.concatenate([wq, wk, wv], axis=0).T             # (D, 3D)
    # Fold fc_output over the n_heads identical head outputs and pre-transpose:
    #   concat([h]*H) @ Wo.T == h @ (sum_h Wo[:, h*D:(h+1)*D]).T
    wo_folded_t = wo.reshape(dim, n_heads, dim).sum(axis=1).T   # (D, D)
    bo2d = bo.reshape(1, dim)

    kernel = functools.partial(_mha_kernel, dim=dim, inv_scale=inv_scale)

    x, soft = pl.pallas_call(
        kernel,
        out_shape=(
            jax.ShapeDtypeStruct((B, S, dim), jnp.float32),
            jax.ShapeDtypeStruct((B, S, S), jnp.float32),
        ),
        in_specs=[pl.BlockSpec(memory_space=pltpu.MemorySpace.VMEM)] * 4,
        out_specs=(pl.BlockSpec(memory_space=pltpu.MemorySpace.VMEM),
                   pl.BlockSpec(memory_space=pltpu.MemorySpace.VMEM)),
    )(q, w_qkv, wo_folded_t, bo2d)

    # All heads are identical by construction; replicate OUTSIDE the kernel so
    # the kernel only writes the attention map once.
    att = jnp.broadcast_to(soft[:, None, :, :], (B, n_heads, S, S))
    return x, att


def _reference(q, params, *, dim, n_heads):
    """Plain-JAX reference mirroring the PyTorch forward, for verification."""
    scale = math.sqrt(dim) * 10.0
    wq, wk, wv, wo, bo = (params["wq"], params["wk"], params["wv"],
                          params["wo"], params["bo"])
    qp = q @ wq.T
    kp = q @ wk.T
    vp = q @ wv.T
    scores = jnp.einsum("bsd,btd->bst", qp, kp) / scale
    soft = jax.nn.softmax(scores, axis=-1) + 1e-05
    head = jnp.einsum("bst,btd->bsd", soft, vp)
    concat = jnp.concatenate([head] * n_heads, axis=-1)
    x = concat @ wo.T + bo
    att = jnp.stack([soft] * n_heads, axis=1)
    return x, att


def _init_params(key, dim, n_heads):
    # torch.nn.Linear default init: U(-1/sqrt(fan_in), 1/sqrt(fan_in))
    k1, k2, k3, k4, k5 = jax.random.split(key, 5)
    lim = 1.0 / math.sqrt(dim)
    lim_o = 1.0 / math.sqrt(dim * n_heads)
    return {
        "wq": jax.random.uniform(k1, (dim, dim), jnp.float32, -lim, lim),
        "wk": jax.random.uniform(k2, (dim, dim), jnp.float32, -lim, lim),
        "wv": jax.random.uniform(k3, (dim, dim), jnp.float32, -lim, lim),
        "wo": jax.random.uniform(k4, (dim, dim * n_heads), jnp.float32,
                                 -lim_o, lim_o),
        "bo": jax.random.uniform(k5, (dim,), jnp.float32, -lim_o, lim_o),
    }


if __name__ == "__main__":
    dim, n_heads = 16, 4
    B, S = 2, 8

    key = jax.random.PRNGKey(0)
    kq, kk, kv, kp = jax.random.split(key, 4)
    q = jax.random.normal(kq, (B, S, dim), jnp.float32)
    k = jax.random.normal(kk, (B, S, dim), jnp.float32)  # ignored (as in torch)
    v = jax.random.normal(kv, (B, S, dim), jnp.float32)  # ignored (as in torch)
    params = _init_params(kp, dim, n_heads)

    x, att = multi_head_attention(q, k, v, params, dim=dim, n_heads=n_heads)
    jax.block_until_ready((x, att))

    x_ref, att_ref = _reference(q, params, dim=dim, n_heads=n_heads)
    assert x.shape == (B, S, dim) and att.shape == (B, n_heads, S, S)
    assert jnp.allclose(x, x_ref, atol=1e-5, rtol=1e-5)
    assert jnp.allclose(att, att_ref, atol=1e-5, rtol=1e-5)

    print("KERNEL_OK")
</pallas_src>

<mosaic_0001>
module attributes {stable_mosaic.version = 11 : i64} {
  func.func @_mha_kernel(%arg0: memref<2x8x16xf32, #tpu.memory_space<vmem>>, %arg1: memref<16x48xf32, #tpu.memory_space<vmem>>, %arg2: memref<16x16xf32, #tpu.memory_space<vmem>>, %arg3: memref<1x16xf32, #tpu.memory_space<vmem>>, %arg4: memref<2x8x16xf32, #tpu.memory_space<vmem>>, %arg5: memref<2x8x8xf32, #tpu.memory_space<vmem>>) attributes {dimension_semantics = [], scalar_prefetch = 0 : i64, scratch_operands = 0 : i64, tpu.core_type = #tpu.core_type<tc>} {
    %c0 = arith.constant 0 : index
    %c0_0 = arith.constant 0 : index
    %c0_1 = arith.constant 0 : index
    %0 = vector.load %arg0[%c0, %c0_0, %c0_1] : memref<2x8x16xf32, #tpu.memory_space<vmem>>, vector<2x8x16xf32>
    %c0_2 = arith.constant 0 : index
    %c0_3 = arith.constant 0 : index
    %1 = vector.load %arg1[%c0_2, %c0_3] : memref<16x48xf32, #tpu.memory_space<vmem>>, vector<16x48xf32>
    "tpu.trace_start"() <{level = 10 : i32, message = "bsd,de->bse"}> : () -> ()
    %cst = arith.constant dense<0.000000e+00> : vector<2x8x48xf32>
    %2 = tpu.matmul %0, %1, %cst {dimension_numbers = #tpu.dot_dimension_numbers<[2], [0], [0, 1], [1], [0, 0, 0, 1, 1, 1], [], []>} : vector<2x8x16xf32>, vector<16x48xf32>, vector<2x8x48xf32> -> vector<2x8x48xf32>
    "tpu.trace_stop"() : () -> ()
    %3 = vector.extract_strided_slice %2 {offsets = [0, 0, 0], sizes = [2, 8, 16], strides = [1, 1, 1]} : vector<2x8x48xf32> to vector<2x8x16xf32>
    %4 = vector.extract_strided_slice %2 {offsets = [0, 0, 16], sizes = [2, 8, 16], strides = [1, 1, 1]} : vector<2x8x48xf32> to vector<2x8x16xf32>
    %5 = vector.extract_strided_slice %2 {offsets = [0, 0, 32], sizes = [2, 8, 16], strides = [1, 1, 1]} : vector<2x8x48xf32> to vector<2x8x16xf32>
    "tpu.trace_start"() <{level = 10 : i32, message = "bsd,btd->bst"}> : () -> ()
    %cst_4 = arith.constant dense<0.000000e+00> : vector<2x8x8xf32>
    %6 = tpu.matmul %3, %4, %cst_4 {dimension_numbers = #tpu.dot_dimension_numbers<[2], [2], [1], [1], [0, 0, 0, 1, 1, 1], [0], [0]>} : vector<2x8x16xf32>, vector<2x8x16xf32>, vector<2x8x8xf32> -> vector<2x8x8xf32>
    "tpu.trace_stop"() : () -> ()
    %cst_5 = arith.constant 2.500000e-02 : f32
    %7 = vector.broadcast %cst_5 : f32 to vector<2x8x8xf32>
    %8 = arith.mulf %6, %7 : vector<2x8x8xf32>
    %cst_6 = arith.constant dense<0xFF800000> : vector<2x8xf32>
    %9 = vector.multi_reduction <maximumf>, %8, %cst_6 [2] : vector<2x8x8xf32> to vector<2x8xf32>
    %10 = vector.shape_cast %9 : vector<2x8xf32> to vector<2x8x1xf32>
    %11 = vector.broadcast %10 : vector<2x8x1xf32> to vector<2x8x8xf32>
    %12 = arith.subf %8, %11 : vector<2x8x8xf32>
    %13 = math.exp %12 : vector<2x8x8xf32>
    %cst_7 = arith.constant dense<0.000000e+00> : vector<2x8xf32>
    %14 = vector.multi_reduction <add>, %13, %cst_7 [2] : vector<2x8x8xf32> to vector<2x8xf32>
    %15 = vector.shape_cast %14 : vector<2x8xf32> to vector<2x8x1xf32>
    %16 = tpu.reciprocal %15 : vector<2x8x1xf32> -> vector<2x8x1xf32>
    %17 = vector.broadcast %16 : vector<2x8x1xf32> to vector<2x8x8xf32>
    %18 = arith.mulf %13, %17 : vector<2x8x8xf32>
    %cst_8 = arith.constant 9.99999974E-6 : f32
    %19 = vector.broadcast %cst_8 : f32 to vector<2x8x8xf32>
    %20 = arith.addf %18, %19 : vector<2x8x8xf32>
    "tpu.trace_start"() <{level = 10 : i32, message = "bst,btd->bsd"}> : () -> ()
    %cst_9 = arith.constant dense<0.000000e+00> : vector<2x8x16xf32>
    %21 = tpu.matmul %20, %5, %cst_9 {dimension_numbers = #tpu.dot_dimension_numbers<[2], [1], [1], [2], [0, 0, 0, 1, 1, 2], [0], [0]>} : vector<2x8x8xf32>, vector<2x8x16xf32>, vector<2x8x16xf32> -> vector<2x8x16xf32>
    "tpu.trace_stop"() : () -> ()
    %c0_10 = arith.constant 0 : index
    %c0_11 = arith.constant 0 : index
    %22 = vector.load %arg2[%c0_10, %c0_11] : memref<16x16xf32, #tpu.memory_space<vmem>>, vector<16x16xf32>
    "tpu.trace_start"() <{level = 10 : i32, message = "bsd,de->bse"}> : () -> ()
    %cst_12 = arith.constant dense<0.000000e+00> : vector<2x8x16xf32>
    %23 = tpu.matmul %21, %22, %cst_12 {dimension_numbers = #tpu.dot_dimension_numbers<[2], [0], [0, 1], [1], [0, 0, 0, 1, 1, 1], [], []>} : vector<2x8x16xf32>, vector<16x16xf32>, vector<2x8x16xf32> -> vector<2x8x16xf32>
    "tpu.trace_stop"() : () -> ()
    %c0_13 = arith.constant 0 : index
    %c0_14 = arith.constant 0 : index
    %24 = vector.load %arg3[%c0_13, %c0_14] : memref<1x16xf32, #tpu.memory_space<vmem>>, vector<1x16xf32>
    %25 = vector.shape_cast %24 : vector<1x16xf32> to vector<1x1x16xf32>
    %26 = vector.broadcast %25 : vector<1x1x16xf32> to vector<2x8x16xf32>
    %27 = arith.addf %23, %26 : vector<2x8x16xf32>
    %c0_15 = arith.constant 0 : index
    %c0_16 = arith.constant 0 : index
    %c0_17 = arith.constant 0 : index
    %28 = vector.load %arg4[%c0_15, %c0_16, %c0_17] : memref<2x8x16xf32, #tpu.memory_space<vmem>>, vector<2x8x16xf32>
    tpu.vector_store %arg4[%c0_15, %c0_16, %c0_17], %27 {strides = array<i32>} : memref<2x8x16xf32, #tpu.memory_space<vmem>>, vector<2x8x16xf32>,
    %c0_18 = arith.constant 0 : index
    %c0_19 = arith.constant 0 : index
    %c0_20 = arith.constant 0 : index
    %29 = vector.load %arg5[%c0_18, %c0_19, %c0_20] : memref<2x8x8xf32, #tpu.memory_space<vmem>>, vector<2x8x8xf32>
    tpu.vector_store %arg5[%c0_18, %c0_19, %c0_20], %20 {strides = array<i32>} : memref<2x8x8xf32, #tpu.memory_space<vmem>>, vector<2x8x8xf32>,
    return
  }
}

</mosaic_0001>

<llo_original>
// kernel: tpu_custom_call.1
$region0: #{tpu_custom_call.1}
  #allocation0 [shape = 'u32[]', space=smem, size = 0x4, offset = 0x4, fixed_abs, tag = 'smem constant byte address 0x4 - core index']
  #allocation1 [shape = 'u32[144,128]{1,0:T(1,128)}', space=vmem, size = 0x12000, scoped, tag = 'internal scratch']
  %s0 = inlined_call_operand.hbm [shape: f32[2,8,16], index: 0, kind: input, shape index: {}]
  %s1 = inlined_call_operand.hbm [shape: f32[16,48], index: 1, kind: input, shape index: {}]
  %s2 = inlined_call_operand.hbm [shape: f32[16,16], index: 2, kind: input, shape index: {}]
  %s3 = inlined_call_operand.vmem [shape: f32[1,16], index: 3, kind: input, shape index: {}]
  %s4 = inlined_call_operand.hbm [shape: f32[2,8,16], index: 4, kind: output, shape index: {0}]
  %s5 = inlined_call_operand.hbm [shape: f32[2,8,8], index: 5, kind: output, shape index: {1}]
  %6 = xla_tuple %s4, %s5
  %s7 = sld [smem:[#allocation0]]
  $region46: #{tpu_custom_call.1} parent=0
    _
  %s9 = ssub.s32 1, %s7
  %s10 = scalar_select 0, %s9, %s7
  $region1: #{tpu_custom_call.1} parent=0
    #allocation2 [shape = 'u8[8192]{0}', space=vmem, size = 0x2000, scoped, tag = 'input window, operand 0, single buffered']
    #allocation3 [shape = 's32[1]{0}', space=sflag, size = 0x4, scoped, tag = 'scoped memory for tpu_custom_call.1']
    #allocation4 [shape = 's32[1]{0}', space=sflag, size = 0x4, scoped, tag = 'scoped memory for tpu_custom_call.1']
    #allocation5 [shape = 'u8[8192]{0}', space=vmem, size = 0x2000, scoped, tag = 'input window, operand 1, single buffered']
    #allocation6 [shape = 's32[1]{0}', space=sflag, size = 0x4, scoped, tag = 'scoped memory for tpu_custom_call.1']
    #allocation7 [shape = 'u8[8192]{0}', space=vmem, size = 0x2000, scoped, tag = 'input window, operand 2, single buffered']
    #allocation8 [shape = 'u8[8192]{0}', space=vmem, size = 0x2000, scoped, tag = 'output window, operand 0, single buffered']
    #allocation9 [shape = 'u8[8192]{0}', space=vmem, size = 0x2000, scoped, tag = 'output window, operand 1, single buffered']
    #allocation10 [shape = 's32[1]{0}', space=sflag, size = 0x4, scoped, tag = 'scoped memory for tpu_custom_call.1']
    %11 = vsyncpa [#allocation3], 0
    %12 = vsyncpa [#allocation6], 0
    %13 = vsyncpa [#allocation4], 0
    %14 = vsyncpa [#allocation10], 0
    // Predicated region
    $region2: #{tpu_custom_call.1} parent=1 // pred_check
      _
    $region3: #{tpu_custom_call.1} parent=1 // pred_check_branch
      %16 = sbr.rel (0) target = $region5
    $region4: #{tpu_custom_call.1} parent=1 // pred_region
      %s18 = ssub.s32 256, 256
      %19 = vsyncadd [#allocation3], %s18
      %s20 = sshll.u32 [#allocation2], 4
      %s21 = int_to_ptr.vmem [resolvable:$true] %s20
      %26 = dma.hbm_to_vmem [thread:$0]  %s0, 256, %s21, [#allocation3], 128, 128, 8
    $region5: #{tpu_custom_call.1} parent=1 // pred_fallthru
      _
    // Predicated region
    $region6: #{tpu_custom_call.1} parent=1 // pred_check
      _
    $region7: #{tpu_custom_call.1} parent=1 // pred_check_branch
      %28 = sbr.rel (0) target = $region9
    $region8: #{tpu_custom_call.1} parent=1 // pred_region
      %s30 = ssub.s32 256, 256
      %31 = vsyncadd [#allocation6], %s30
      %s32 = sshll.u32 [#allocation5], 4
      %s33 = int_to_ptr.vmem [resolvable:$true] %s32
      %38 = dma.hbm_to_vmem [thread:$0]  %s1, 256, %s33, [#allocation6], 128, 128, 8
    $region9: #{tpu_custom_call.1} parent=1 // pred_fallthru
      _
    // Predicated region
    $region10: #{tpu_custom_call.1} parent=1 // pred_check
      _
    $region11: #{tpu_custom_call.1} parent=1 // pred_check_branch
      %40 = sbr.rel (0) target = $region13
    $region12: #{tpu_custom_call.1} parent=1 // pred_region
      %s42 = ssub.s32 256, 256
      %43 = vsyncadd [#allocation6], %s42
      %s44 = sshll.u32 [#allocation7], 4
      %s45 = int_to_ptr.vmem [resolvable:$true] %s44
      %50 = dma.hbm_to_vmem [thread:$0]  %s2, 256, %s45, [#allocation6], 128, 128, 8
    $region13: #{tpu_custom_call.1} parent=1 // pred_fallthru
      _
    // Predicated region
    $region14: #{tpu_custom_call.1} parent=1 // pred_check
      _
    $region15: #{tpu_custom_call.1} parent=1 // pred_check_branch
      %52 = sbr.rel (0) target = $region17
    $region16: #{tpu_custom_call.1} parent=1 // pred_region
      _
    $region17: #{tpu_custom_call.1} parent=1 // pred_fallthru
      _
    // Predicated region
    $region18: #{tpu_custom_call.1} parent=1 // pred_check
      _
    $region19: #{tpu_custom_call.1} parent=1 // pred_check_branch
      %54 = sbr.rel (0) target = $region21
    $region20: #{tpu_custom_call.1} parent=1 // pred_region
      %55 = dma.done [#allocation3], 256
    $region21: #{tpu_custom_call.1} parent=1 // pred_fallthru
      _
    // Predicated region
    $region22: #{tpu_custom_call.1} parent=1 // pred_check
      _
    $region23: #{tpu_custom_call.1} parent=1 // pred_check_branch
      %57 = sbr.rel (0) target = $region25
    $region24: #{tpu_custom_call.1} parent=1 // pred_region
      %58 = dma.done [#allocation6], 256
    $region25: #{tpu_custom_call.1} parent=1 // pred_fallthru
      _
    // Predicated region
    $region26: #{tpu_custom_call.1} parent=1 // pred_check
      _
    $region27: #{tpu_custom_call.1} parent=1 // pred_check_branch
      %60 = sbr.rel (0) target = $region29
    $region28: #{tpu_custom_call.1} parent=1 // pred_region
      %61 = dma.done [#allocation6], 256
    $region29: #{tpu_custom_call.1} parent=1 // pred_fallthru
      _
    %v62 = vld [vmem:[#allocation2] sm:$0xff]
    %v63 = vld [vmem:[#allocation2 + $0x8] sm:$0xff]
    %v64 = vld [vmem:[#allocation5] sm:$0xff]
    %v65 = vld [vmem:[#allocation5 + $0x8] sm:$0xff]
    %vm66 = vcmask 130048
    %v68 = vsel %vm66, %v62, 0
    %v71 = vsel %vm66, %v63, 0
    %73 = vmatprep.subr.mxu0 0.0
    %74 = vmatpush1.msra.mxu0 %v64
    %75 = vmatprep.subr.mxu0 0.0
    %76 = vmatpush1.msra.mxu0 %v65
    %77 = vmatprep.subr.mxu0 0.0
    %78 = vmatpush1.msra.mxu0 0.0
    %79 = vmatprep.subr.mxu0 0.0
    %80 = vmatpush1.msra.mxu0 0.0
    %81 = vmatprep.subr.mxu0 0.0
    %82 = vmatpush1.msra.mxu0 0.0
    %83 = vmatprep.subr.mxu0 0.0
    %84 = vmatpush1.msra.mxu0 0.0
    %85 = vmatprep.subr.mxu0 0.0
    %86 = vmatpush1.msra.mxu0 0.0
    %87 = vmatprep.subr.mxu0 0.0
    %88 = vmatpush1.msra.mxu0 0.0
    %89 = vmatprep.subr.mxu0 0.0
    %90 = vmatpush1.msra.mxu0 0.0
    %91 = vmatprep.subr.mxu0 0.0
    %92 = vmatpush1.msra.mxu0 0.0
    %93 = vmatprep.subr.mxu0 0.0
    %94 = vmatpush1.msra.mxu0 0.0
    %95 = vmatprep.subr.mxu0 0.0
    %96 = vmatpush1.msra.mxu0 0.0
    %97 = vmatprep.subr.mxu0 0.0
    %98 = vmatpush1.msra.mxu0 0.0
    %99 = vmatprep.subr.mxu0 0.0
    %100 = vmatpush1.msra.mxu0 0.0
    %101 = vmatprep.subr.mxu0 0.0
    %102 = vmatpush1.msra.mxu0 0.0
    %103 = vmatprep.subr.mxu0 0.0
    %104 = vmatpush1.msra.mxu0 0.0
    %105 = vmatprep.subr.mxu0 0.0
    %106 = vmatpush1.msra.mxu0 0.0
    %107 = vmatprep.subr.mxu0 0.0
    %108 = vmatpush1.msra.mxu0 0.0
    %109 = vmatprep.subr.mxu0 0.0
    %110 = vmatpush1.msra.mxu0 0.0
    %111 = vmatprep.subr.mxu0 0.0
    %112 = vmatpush1.msra.mxu0 0.0
    %113 = vmatprep.subr.mxu0 0.0
    %114 = vmatpush1.msra.mxu0 0.0
    %115 = vmatprep.subr.mxu0 0.0
    %116 = vmatpush1.msra.mxu0 0.0
    %117 = vmatprep.subr.mxu0 0.0
    %118 = vmatpush1.msra.mxu0 0.0
    %119 = vmatprep.subr.mxu0 0.0
    %120 = vmatpush1.msra.mxu0 0.0
    %121 = vmatprep.subr.mxu0 0.0
    %122 = vmatpush1.msra.mxu0 0.0
    %123 = vmatprep.subr.mxu0 0.0
    %124 = vmatpush1.msra.mxu0 0.0
    %125 = vmatprep.subr.mxu0 0.0
    %126 = vmatpush1.msra.mxu0 0.0
    %127 = vmatprep.subr.mxu0 0.0
    %128 = vmatpush1.msra.mxu0 0.0
    %129 = vmatprep.subr.mxu0 0.0
    %130 = vmatpush1.msra.mxu0 0.0
    %131 = vmatprep.subr.mxu0 0.0
    %132 = vmatpush1.msra.mxu0 0.0
    %133 = vmatprep.subr.mxu0 0.0
    %134 = vmatpush1.msra.mxu0 0.0
    %135 = vmatprep.subr.mxu0 0.0
    %136 = vmatpush1.msra.mxu0 0.0
    %137 = vmatprep.mubr.f32.mxu0 0.0
    %138 = vmatmul.mubr.f32.gmra.mrb[0].mxu0 %v68
    %v139 = vpop.f32.mrb[0].mxu0
    %v140 = vadd.f32 0.0, %v139
    %v141 = vpop.f32.mrb[0].mxu0
    %142 = vmatprep.mubr.f32.mxu0 0.0
    %143 = vmatmul.mubr.f32.gmra.mrb[0].mxu0 %v71
    %v144 = vpop.f32.mrb[0].mxu0
    %v145 = vadd.f32 0.0, %v144
    %v146 = vpop.f32.mrb[0].mxu0
    %147 = vdwg.mxu0
    %149 = vrot.lane.b32.xlu0 %v140, 112
    %v150 = vpop.permute.xlu0 %149
    %v151 = vsel %vm66, %v140, 0
    %v153 = vsel %vm66, %v150, 0
    %155 = vmatprep.subr.mxu0 0.0
    %156 = vmatpush1.xpose.msra.mxu0 %v153
    %157 = vmatprep.subr.mxu0 0.0
    %158 = vmatpush1.xpose.msra.mxu0 0.0
    %159 = vmatprep.subr.mxu0 0.0
    %160 = vmatpush1.xpose.msra.mxu0 0.0
    %161 = vmatprep.subr.mxu0 0.0
    %162 = vmatpush1.xpose.msra.mxu0 0.0
    %163 = vmatprep.subr.mxu0 0.0
    %164 = vmatpush1.xpose.msra.mxu0 0.0
    %165 = vmatprep.subr.mxu0 0.0
    %166 = vmatpush1.xpose.msra.mxu0 0.0
    %167 = vmatprep.subr.mxu0 0.0
    %168 = vmatpush1.xpose.msra.mxu0 0.0
    %169 = vmatprep.subr.mxu0 0.0
    %170 = vmatpush1.xpose.msra.mxu0 0.0
    %171 = vmatprep.subr.mxu0 0.0
    %172 = vmatpush1.xpose.msra.mxu0 0.0
    %173 = vmatprep.subr.mxu0 0.0
    %174 = vmatpush1.xpose.msra.mxu0 0.0
    %175 = vmatprep.subr.mxu0 0.0
    %176 = vmatpush1.xpose.msra.mxu0 0.0
    %177 = vmatprep.subr.mxu0 0.0
    %178 = vmatpush1.xpose.msra.mxu0 0.0
    %179 = vmatprep.subr.mxu0 0.0
    %180 = vmatpush1.xpose.msra.mxu0 0.0
    %181 = vmatprep.subr.mxu0 0.0
    %182 = vmatpush1.xpose.msra.mxu0 0.0
    %183 = vmatprep.subr.mxu0 0.0
    %184 = vmatpush1.xpose.msra.mxu0 0.0
    %185 = vmatprep.subr.mxu0 0.0
    %186 = vmatpush1.xpose.msra.mxu0 0.0
    %187 = vmatprep.subr.mxu0 0.0
    %188 = vmatpush1.xpose.msra.mxu0 0.0
    %189 = vmatprep.subr.mxu0 0.0
    %190 = vmatpush1.xpose.msra.mxu0 0.0
    %191 = vmatprep.subr.mxu0 0.0
    %192 = vmatpush1.xpose.msra.mxu0 0.0
    %193 = vmatprep.subr.mxu0 0.0
    %194 = vmatpush1.xpose.msra.mxu0 0.0
    %195 = vmatprep.subr.mxu0 0.0
    %196 = vmatpush1.xpose.msra.mxu0 0.0
    %197 = vmatprep.subr.mxu0 0.0
    %198 = vmatpush1.xpose.msra.mxu0 0.0
    %199 = vmatprep.subr.mxu0 0.0
    %200 = vmatpush1.xpose.msra.mxu0 0.0
    %201 = vmatprep.subr.mxu0 0.0
    %202 = vmatpush1.xpose.msra.mxu0 0.0
    %203 = vmatprep.subr.mxu0 0.0
    %204 = vmatpush1.xpose.msra.mxu0 0.0
    %205 = vmatprep.subr.mxu0 0.0
    %206 = vmatpush1.xpose.msra.mxu0 0.0
    %207 = vmatprep.subr.mxu0 0.0
    %208 = vmatpush1.xpose.msra.mxu0 0.0
    %209 = vmatprep.subr.mxu0 0.0
    %210 = vmatpush1.xpose.msra.mxu0 0.0
    %211 = vmatprep.subr.mxu0 0.0
    %212 = vmatpush1.xpose.msra.mxu0 0.0
    %213 = vmatprep.subr.mxu0 0.0
    %214 = vmatpush1.xpose.msra.mxu0 0.0
    %215 = vmatprep.subr.mxu0 0.0
    %216 = vmatpush1.xpose.msra.mxu0 0.0
    %217 = vmatprep.subr.mxu0 0.0
    %218 = vmatpush1.xpose.msra.mxu0 0.0
    %219 = vmatprep.mubr.f32.mxu0 0.0
    %220 = vmatmul.mubr.f32.gmra.mrb[0].mxu0 %v151
    %v221 = vpop.f32.mrb[0].mxu0
    %v222 = vadd.f32 0.0, %v221
    %v223 = vpop.f32.mrb[0].mxu0
    %224 = vdwg.mxu0
    %226 = vrot.lane.b32.xlu0 %v145, 112
    %v227 = vpop.permute.xlu0 %226
    %v228 = vsel %vm66, %v145, 0
    %v230 = vsel %vm66, %v227, 0
    %232 = vmatprep.subr.mxu0 0.0
    %233 = vmatpush1.xpose.msra.mxu0 %v230
    %234 = vmatprep.subr.mxu0 0.0
    %235 = vmatpush1.xpose.msra.mxu0 0.0
    %236 = vmatprep.subr.mxu0 0.0
    %237 = vmatpush1.xpose.msra.mxu0 0.0
    %238 = vmatprep.subr.mxu0 0.0
    %239 = vmatpush1.xpose.msra.mxu0 0.0
    %240 = vmatprep.subr.mxu0 0.0
    %241 = vmatpush1.xpose.msra.mxu0 0.0
    %242 = vmatprep.subr.mxu0 0.0
    %243 = vmatpush1.xpose.msra.mxu0 0.0
    %244 = vmatprep.subr.mxu0 0.0
    %245 = vmatpush1.xpose.msra.mxu0 0.0
    %246 = vmatprep.subr.mxu0 0.0
    %247 = vmatpush1.xpose.msra.mxu0 0.0
    %248 = vmatprep.subr.mxu0 0.0
    %249 = vmatpush1.xpose.msra.mxu0 0.0
    %250 = vmatprep.subr.mxu0 0.0
    %251 = vmatpush1.xpose.msra.mxu0 0.0
    %252 = vmatprep.subr.mxu0 0.0
    %253 = vmatpush1.xpose.msra.mxu0 0.0
    %254 = vmatprep.subr.mxu0 0.0
    %255 = vmatpush1.xpose.msra.mxu0 0.0
    %256 = vmatprep.subr.mxu0 0.0
    %257 = vmatpush1.xpose.msra.mxu0 0.0
    %258 = vmatprep.subr.mxu0 0.0
    %259 = vmatpush1.xpose.msra.mxu0 0.0
    %260 = vmatprep.subr.mxu0 0.0
    %261 = vmatpush1.xpose.msra.mxu0 0.0
    %262 = vmatprep.subr.mxu0 0.0
    %263 = vmatpush1.xpose.msra.mxu0 0.0
    %264 = vmatprep.subr.mxu0 0.0
    %265 = vmatpush1.xpose.msra.mxu0 0.0
    %266 = vmatprep.subr.mxu0 0.0
    %267 = vmatpush1.xpose.msra.mxu0 0.0
    %268 = vmatprep.subr.mxu0 0.0
    %269 = vmatpush1.xpose.msra.mxu0 0.0
    %270 = vmatprep.subr.mxu0 0.0
    %271 = vmatpush1.xpose.msra.mxu0 0.0
    %272 = vmatprep.subr.mxu0 0.0
    %273 = vmatpush1.xpose.msra.mxu0 0.0
    %274 = vmatprep.subr.mxu0 0.0
    %275 = vmatpush1.xpose.msra.mxu0 0.0
    %276 = vmatprep.subr.mxu0 0.0
    %277 = vmatpush1.xpose.msra.mxu0 0.0
    %278 = vmatprep.subr.mxu0 0.0
    %279 = vmatpush1.xpose.msra.mxu0 0.0
    %280 = vmatprep.subr.mxu0 0.0
    %281 = vmatpush1.xpose.msra.mxu0 0.0
    %282 = vmatprep.subr.mxu0 0.0
    %283 = vmatpush1.xpose.msra.mxu0 0.0
    %284 = vmatprep.subr.mxu0 0.0
    %285 = vmatpush1.xpose.msra.mxu0 0.0
    %286 = vmatprep.subr.mxu0 0.0
    %287 = vmatpush1.xpose.msra.mxu0 0.0
    %288 = vmatprep.subr.mxu0 0.0
    %289 = vmatpush1.xpose.msra.mxu0 0.0
    %290 = vmatprep.subr.mxu0 0.0
    %291 = vmatpush1.xpose.msra.mxu0 0.0
    %292 = vmatprep.subr.mxu0 0.0
    %293 = vmatpush1.xpose.msra.mxu0 0.0
    %294 = vmatprep.subr.mxu0 0.0
    %295 = vmatpush1.xpose.msra.mxu0 0.0
    %296 = vmatprep.mubr.f32.mxu0 0.0
    %297 = vmatmul.mubr.f32.gmra.mrb[0].mxu0 %v228
    %v298 = vpop.f32.mrb[0].mxu0
    %v299 = vadd.f32 0.0, %v298
    %v300 = vpop.f32.mrb[0].mxu0
    %301 = vdwg.mxu0
    %v302 = vmul.f32 %v222, 0.025
    %v303 = vmul.f32 %v299, 0.025
    %vm304 = vcmask 64512
    %v305 = vsel %vm304, %v302, -inf
    %306 = vmax.xlane.f32.xlu0 %v305
    %v307 = vpop.xlane.xlu0 %306
    %v308 = vsel %vm304, %v303, -inf
    %309 = vmax.xlane.f32.xlu0 %v308
    %v310 = vpop.xlane.xlu0 %309
    %v311 = vsub.f32 %v302, %v307
    %v312 = vsub.f32 %v303, %v310
    %v313 = vmul.f32 %v311, 1.442695
    %v314 = vpow.pop %v313
    %v315 = vmul.f32 %v312, 1.442695
    %v316 = vpow.pop %v315
    %v317 = vsel %vm304, %v314, 0.0
    %318 = vadd.xlane.f32.xlu0 %v317
    %v319 = vpop.xlane.xlu0 %318
    %v320 = vsel %vm304, %v316, 0.0
    %321 = vadd.xlane.f32.xlu0 %v320
    %v322 = vpop.xlane.xlu0 %321
    %v323 = vrcp.pop %v319
    %v324 = vrcp.pop %v322
    %v325 = vmul.f32 %v314, %v323
    %v326 = vmul.f32 %v316, %v324
    %v327 = vadd.f32 %v325, 1e-05
    %v328 = vadd.f32 %v326, 1e-05
    %329 = vrot.lane.b32.xlu0 %v140, 96
    %v330 = vpop.permute.xlu0 %329
    %v333 = vsel %vm304, %v327, 0
    %335 = vmatprep.subr.mxu0 0.0
    %336 = vmatpush1.msra.mxu0 %v330
    %337 = vmatprep.subr.mxu0 0.0
    %338 = vmatpush1.msra.mxu0 0.0
    %339 = vmatprep.subr.mxu0 0.0
    %340 = vmatpush1.msra.mxu0 0.0
    %341 = vmatprep.subr.mxu0 0.0
    %342 = vmatpush1.msra.mxu0 0.0
    %343 = vmatprep.subr.mxu0 0.0
    %344 = vmatpush1.msra.mxu0 0.0
    %345 = vmatprep.subr.mxu0 0.0
    %346 = vmatpush1.msra.mxu0 0.0
    %347 = vmatprep.subr.mxu0 0.0
    %348 = vmatpush1.msra.mxu0 0.0
    %349 = vmatprep.subr.mxu0 0.0
    %350 = vmatpush1.msra.mxu0 0.0
    %351 = vmatprep.subr.mxu0 0.0
    %352 = vmatpush1.msra.mxu0 0.0
    %353 = vmatprep.subr.mxu0 0.0
    %354 = vmatpush1.msra.mxu0 0.0
    %355 = vmatprep.subr.mxu0 0.0
    %356 = vmatpush1.msra.mxu0 0.0
    %357 = vmatprep.subr.mxu0 0.0
    %358 = vmatpush1.msra.mxu0 0.0
    %359 = vmatprep.subr.mxu0 0.0
    %360 = vmatpush1.msra.mxu0 0.0
    %361 = vmatprep.subr.mxu0 0.0
    %362 = vmatpush1.msra.mxu0 0.0
    %363 = vmatprep.subr.mxu0 0.0
    %364 = vmatpush1.msra.mxu0 0.0
    %365 = vmatprep.subr.mxu0 0.0
    %366 = vmatpush1.msra.mxu0 0.0
    %367 = vmatprep.subr.mxu0 0.0
    %368 = vmatpush1.msra.mxu0 0.0
    %369 = vmatprep.subr.mxu0 0.0
    %370 = vmatpush1.msra.mxu0 0.0
    %371 = vmatprep.subr.mxu0 0.0
    %372 = vmatpush1.msra.mxu0 0.0
    %373 = vmatprep.subr.mxu0 0.0
    %374 = vmatpush1.msra.mxu0 0.0
    %375 = vmatprep.subr.mxu0 0.0
    %376 = vmatpush1.msra.mxu0 0.0
    %377 = vmatprep.subr.mxu0 0.0
    %378 = vmatpush1.msra.mxu0 0.0
    %379 = vmatprep.subr.mxu0 0.0
    %380 = vmatpush1.msra.mxu0 0.0
    %381 = vmatprep.subr.mxu0 0.0
    %382 = vmatpush1.msra.mxu0 0.0
    %383 = vmatprep.subr.mxu0 0.0
    %384 = vmatpush1.msra.mxu0 0.0
    %385 = vmatprep.subr.mxu0 0.0
    %386 = vmatpush1.msra.mxu0 0.0
    %387 = vmatprep.subr.mxu0 0.0
    %388 = vmatpush1.msra.mxu0 0.0
    %389 = vmatprep.subr.mxu0 0.0
    %390 = vmatpush1.msra.mxu0 0.0
    %391 = vmatprep.subr.mxu0 0.0
    %392 = vmatpush1.msra.mxu0 0.0
    %393 = vmatprep.subr.mxu0 0.0
    %394 = vmatpush1.msra.mxu0 0.0
    %395 = vmatprep.subr.mxu0 0.0
    %396 = vmatpush1.msra.mxu0 0.0
    %397 = vmatprep.subr.mxu0 0.0
    %398 = vmatpush1.msra.mxu0 0.0
    %399 = vmatprep.mubr.f32.mxu0 0.0
    %400 = vmatmul.mubr.f32.gmra.mrb[0].mxu0 %v333
    %v401 = vpop.f32.mrb[0].mxu0
    %v402 = vadd.f32 0.0, %v401
    %v403 = vpop.f32.mrb[0].mxu0
    %404 = vdwg.mxu0
    %405 = vrot.lane.b32.xlu0 %v145, 96
    %v406 = vpop.permute.xlu0 %405
    %v409 = vsel %vm304, %v328, 0
    %411 = vmatprep.subr.mxu0 0.0
    %412 = vmatpush1.msra.mxu0 %v406
    %413 = vmatprep.subr.mxu0 0.0
    %414 = vmatpush1.msra.mxu0 0.0
    %415 = vmatprep.subr.mxu0 0.0
    %416 = vmatpush1.msra.mxu0 0.0
    %417 = vmatprep.subr.mxu0 0.0
    %418 = vmatpush1.msra.mxu0 0.0
    %419 = vmatprep.subr.mxu0 0.0
    %420 = vmatpush1.msra.mxu0 0.0
    %421 = vmatprep.subr.mxu0 0.0
    %422 = vmatpush1.msra.mxu0 0.0
    %423 = vmatprep.subr.mxu0 0.0
    %424 = vmatpush1.msra.mxu0 0.0
    %425 = vmatprep.subr.mxu0 0.0
    %426 = vmatpush1.msra.mxu0 0.0
    %427 = vmatprep.subr.mxu0 0.0
    %428 = vmatpush1.msra.mxu0 0.0
    %429 = vmatprep.subr.mxu0 0.0
    %430 = vmatpush1.msra.mxu0 0.0
    %431 = vmatprep.subr.mxu0 0.0
    %432 = vmatpush1.msra.mxu0 0.0
    %433 = vmatprep.subr.mxu0 0.0
    %434 = vmatpush1.msra.mxu0 0.0
    %435 = vmatprep.subr.mxu0 0.0
    %436 = vmatpush1.msra.mxu0 0.0
    %437 = vmatprep.subr.mxu0 0.0
    %438 = vmatpush1.msra.mxu0 0.0
    %439 = vmatprep.subr.mxu0 0.0
    %440 = vmatpush1.msra.mxu0 0.0
    %441 = vmatprep.subr.mxu0 0.0
    %442 = vmatpush1.msra.mxu0 0.0
    %443 = vmatprep.subr.mxu0 0.0
    %444 = vmatpush1.msra.mxu0 0.0
    %445 = vmatprep.subr.mxu0 0.0
    %446 = vmatpush1.msra.mxu0 0.0
    %447 = vmatprep.subr.mxu0 0.0
    %448 = vmatpush1.msra.mxu0 0.0
    %449 = vmatprep.subr.mxu0 0.0
    %450 = vmatpush1.msra.mxu0 0.0
    %451 = vmatprep.subr.mxu0 0.0
    %452 = vmatpush1.msra.mxu0 0.0
    %453 = vmatprep.subr.mxu0 0.0
    %454 = vmatpush1.msra.mxu0 0.0
    %455 = vmatprep.subr.mxu0 0.0
    %456 = vmatpush1.msra.mxu0 0.0
    %457 = vmatprep.subr.mxu0 0.0
    %458 = vmatpush1.msra.mxu0 0.0
    %459 = vmatprep.subr.mxu0 0.0
    %460 = vmatpush1.msra.mxu0 0.0
    %461 = vmatprep.subr.mxu0 0.0
    %462 = vmatpush1.msra.mxu0 0.0
    %463 = vmatprep.subr.mxu0 0.0
    %464 = vmatpush1.msra.mxu0 0.0
    %465 = vmatprep.subr.mxu0 0.0
    %466 = vmatpush1.msra.mxu0 0.0
    %467 = vmatprep.subr.mxu0 0.0
    %468 = vmatpush1.msra.mxu0 0.0
    %469 = vmatprep.subr.mxu0 0.0
    %470 = vmatpush1.msra.mxu0 0.0
    %471 = vmatprep.subr.mxu0 0.0
    %472 = vmatpush1.msra.mxu0 0.0
    %473 = vmatprep.subr.mxu0 0.0
    %474 = vmatpush1.msra.mxu0 0.0
    %475 = vmatprep.mubr.f32.mxu0 0.0
    %476 = vmatmul.mubr.f32.gmra.mrb[0].mxu0 %v409
    %v477 = vpop.f32.mrb[0].mxu0
    %v478 = vadd.f32 0.0, %v477
    %v479 = vpop.f32.mrb[0].mxu0
    %480 = vdwg.mxu0
    %v481 = vld [vmem:[#allocation7] sm:$0xff]
    %v482 = vld [vmem:[#allocation7 + $0x8] sm:$0xff]
    %v483 = vld [vmem:[%s3] sm:$0x1]
    %v485 = vlaneseq
    %v486 = vshrl.u32 %v485, 7
    %v487 = vsub.s32 0, %v486
    %v488 = vrot.slane %v483, %v487
    %v491 = vsel %vm66, %v402, 0
    %v494 = vsel %vm66, %v478, 0
    %496 = vmatprep.subr.mxu0 0.0
    %497 = vmatpush1.msra.mxu0 %v481
    %498 = vmatprep.subr.mxu0 0.0
    %499 = vmatpush1.msra.mxu0 %v482
    %500 = vmatprep.subr.mxu0 0.0
    %501 = vmatpush1.msra.mxu0 0.0
    %502 = vmatprep.subr.mxu0 0.0
    %503 = vmatpush1.msra.mxu0 0.0
    %504 = vmatprep.subr.mxu0 0.0
    %505 = vmatpush1.msra.mxu0 0.0
    %506 = vmatprep.subr.mxu0 0.0
    %507 = vmatpush1.msra.mxu0 0.0
    %508 = vmatprep.subr.mxu0 0.0
    %509 = vmatpush1.msra.mxu0 0.0
    %510 = vmatprep.subr.mxu0 0.0
    %511 = vmatpush1.msra.mxu0 0.0
    %512 = vmatprep.subr.mxu0 0.0
    %513 = vmatpush1.msra.mxu0 0.0
    %514 = vmatprep.subr.mxu0 0.0
    %515 = vmatpush1.msra.mxu0 0.0
    %516 = vmatprep.subr.mxu0 0.0
    %517 = vmatpush1.msra.mxu0 0.0
    %518 = vmatprep.subr.mxu0 0.0
    %519 = vmatpush1.msra.mxu0 0.0
    %520 = vmatprep.subr.mxu0 0.0
    %521 = vmatpush1.msra.mxu0 0.0
    %522 = vmatprep.subr.mxu0 0.0
    %523 = vmatpush1.msra.mxu0 0.0
    %524 = vmatprep.subr.mxu0 0.0
    %525 = vmatpush1.msra.mxu0 0.0
    %526 = vmatprep.subr.mxu0 0.0
    %527 = vmatpush1.msra.mxu0 0.0
    %528 = vmatprep.subr.mxu0 0.0
    %529 = vmatpush1.msra.mxu0 0.0
    %530 = vmatprep.subr.mxu0 0.0
    %531 = vmatpush1.msra.mxu0 0.0
    %532 = vmatprep.subr.mxu0 0.0
    %533 = vmatpush1.msra.mxu0 0.0
    %534 = vmatprep.subr.mxu0 0.0
    %535 = vmatpush1.msra.mxu0 0.0
    %536 = vmatprep.subr.mxu0 0.0
    %537 = vmatpush1.msra.mxu0 0.0
    %538 = vmatprep.subr.mxu0 0.0
    %539 = vmatpush1.msra.mxu0 0.0
    %540 = vmatprep.subr.mxu0 0.0
    %541 = vmatpush1.msra.mxu0 0.0
    %542 = vmatprep.subr.mxu0 0.0
    %543 = vmatpush1.msra.mxu0 0.0
    %544 = vmatprep.subr.mxu0 0.0
    %545 = vmatpush1.msra.mxu0 0.0
    %546 = vmatprep.subr.mxu0 0.0
    %547 = vmatpush1.msra.mxu0 0.0
    %548 = vmatprep.subr.mxu0 0.0
    %549 = vmatpush1.msra.mxu0 0.0
    %550 = vmatprep.subr.mxu0 0.0
    %551 = vmatpush1.msra.mxu0 0.0
    %552 = vmatprep.subr.mxu0 0.0
    %553 = vmatpush1.msra.mxu0 0.0
    %554 = vmatprep.subr.mxu0 0.0
    %555 = vmatpush1.msra.mxu0 0.0
    %556 = vmatprep.subr.mxu0 0.0
    %557 = vmatpush1.msra.mxu0 0.0
    %558 = vmatprep.subr.mxu0 0.0
    %559 = vmatpush1.msra.mxu0 0.0
    %560 = vmatprep.mubr.f32.mxu0 0.0
    %561 = vmatmul.mubr.f32.gmra.mrb[0].mxu0 %v491
    %v562 = vpop.f32.mrb[0].mxu0
    %v563 = vadd.f32 %v488, %v562
    %v564 = vpop.f32.mrb[0].mxu0
    %565 = vmatprep.mubr.f32.mxu0 0.0
    %566 = vmatmul.mubr.f32.gmra.mrb[0].mxu0 %v494
    %v567 = vpop.f32.mrb[0].mxu0
    %v568 = vadd.f32 %v488, %v567
    %v569 = vpop.f32.mrb[0].mxu0
    %570 = vdwg.mxu0
    %571 = vst.msk [vmem:[#allocation8] sm:$0xff] %vm66, %v563
    %572 = vst.msk [vmem:[#allocation8 + $0x8] sm:$0xff] %vm66, %v568
    %573 = vst.msk [vmem:[#allocation9] sm:$0xff] %vm304, %v327
    %574 = vst.msk [vmem:[#allocation9 + $0x8] sm:$0xff] %vm304, %v328
    // Predicated region
    $region30: #{tpu_custom_call.1} parent=1 // pred_check
      _
    $region31: #{tpu_custom_call.1} parent=1 // pred_check_branch
      %576 = sbr.rel (0) target = $region33
    $region32: #{tpu_custom_call.1} parent=1 // pred_region
      %s578 = ssub.s32 256, 256
      %579 = vsyncadd [#allocation4], %s578
      %s580 = sshll.u32 [#allocation8], 4
      %s581 = int_to_ptr.vmem [resolvable:$true] %s580
      %586 = dma.vmem_to_hbm [thread:$0]  %s581, 256, %s4, [#allocation4], 128, 128, 8
    $region33: #{tpu_custom_call.1} parent=1 // pred_fallthru
      _
    // Predicated region
    $region34: #{tpu_custom_call.1} parent=1 // pred_check
      _
    $region35: #{tpu_custom_call.1} parent=1 // pred_check_branch
      %588 = sbr.rel (0) target = $region37
    $region36: #{tpu_custom_call.1} parent=1 // pred_region
      %s590 = ssub.s32 256, 256
      %591 = vsyncadd [#allocation10], %s590
      %s592 = sshll.u32 [#allocation9], 4
      %s593 = int_to_ptr.vmem [resolvable:$true] %s592
      %598 = dma.vmem_to_hbm [thread:$0]  %s593, 256, %s5, [#allocation10], 128, 128, 8
    $region37: #{tpu_custom_call.1} parent=1 // pred_fallthru
      _
    // Predicated region
    $region38: #{tpu_custom_call.1} parent=1 // pred_check
      _
    $region39: #{tpu_custom_call.1} parent=1 // pred_check_branch
      %600 = sbr.rel (0) target = $region41
    $region40: #{tpu_custom_call.1} parent=1 // pred_region
      %601 = dma.done [#allocation4], 256
    $region41: #{tpu_custom_call.1} parent=1 // pred_fallthru
      _
    // Predicated region
    $region42: #{tpu_custom_call.1} parent=1 // pred_check
      _
    $region43: #{tpu_custom_call.1} parent=1 // pred_check_branch
      %603 = sbr.rel (0) target = $region45
    $region44: #{tpu_custom_call.1} parent=1 // pred_region
      %604 = dma.done [#allocation10], 256
    $region45: #{tpu_custom_call.1} parent=1 // pred_fallthru
      _
    %605 = vsyncpa [#allocation3], 1
    %606 = vsyncpa [#allocation6], 1
    %607 = vsyncpa [#allocation4], 1
    %608 = vsyncpa [#allocation10], 1

</llo_original>
